<compile_context>
chip_gen: v6e
topology: v6e:2x2x1
jax: 0.10.0
libtpu: 0.0.40
codegen_flags: <defaults>
</compile_context>

<pallas_src>
import math

import jax
import jax.numpy as jnp
from jax import lax
from jax.experimental import pallas as pl
from jax.experimental.pallas import tpu as pltpu


def _get_pad(size, multiple):
    """Same as CenterPadding._get_pad."""
    new_size = math.ceil(size / multiple) * multiple
    pad_size = new_size - size
    pad_left = pad_size // 2
    pad_right = pad_size - pad_left
    return pad_left, pad_right


def _round_up(x, m):
    return ((x + m - 1) // m) * m


def _sublane(itemsize):
    # Sublane multiple of the VMEM tile for this dtype: 8 (f32), 16 (bf16), 32 (i8).
    return max(8, 32 // max(1, itemsize))


def _vmem_capacity_bytes():
    try:
        info = pltpu.get_tpu_info()
        cap = getattr(info, "vmem_capacity_bytes", None)
        if cap:
            return int(cap)
    except Exception:
        pass
    return 64 * 1024 * 1024  # conservative default (v7x)


_MIN_BLOCK_BYTES = 512 * 1024            # don't shrink blocks below this for step count
_FLAT_BLOCK_CAP_BYTES = 4 * 1024 * 1024  # extra cap for the unrolled lane-dense path
_MAX_UNROLL_ROWS = 64                    # max H for the unrolled roll/where path
_TARGET_MIN_STEPS = 8                    # >= 2 steps per TC on 2-TC chips, 4+ deep pipeline


def _choose_cblk(nc, per_chan_bytes, budget_bytes, sublane_align=None):
    """Channels per block: fit the padded-VMEM budget, keep >= ~8 grid steps
    (but never blocks below ~512 KiB), optionally keep the sublane dim aligned."""
    per_chan_bytes = max(1, per_chan_bytes)
    by_budget = max(1, budget_bytes // per_chan_bytes)
    min_chan = max(1, _MIN_BLOCK_BYTES // per_chan_bytes)
    by_steps = max(min_chan, nc // _TARGET_MIN_STEPS)
    cblk = min(nc, by_budget, by_steps)
    if sublane_align is not None and cblk < nc:
        # In the flattened 2-D layout cblk is the sublane dim of the block:
        # it must be a multiple of the dtype sublane tile or equal nc.
        if nc <= sublane_align:
            cblk = nc
        else:
            cblk = min(nc, max(sublane_align, (cblk // sublane_align) * sublane_align))
    return max(1, cblk)


def _center_pad_flat(x_flat, nc, H, W, H_out, W_out, ph_l, pw_l, vmem_limit, budget):
    """Lane-dense path (W_out < 128): each channel plane is one flat lane row."""
    dt = x_flat.dtype
    itemsize = jnp.dtype(dt).itemsize
    sub = _sublane(itemsize)
    HW, HWo = H * W, H_out * W_out
    LP = _round_up(HWo, 128)  # 128-aligned canvas width (roll/iota on aligned lanes)

    # Padded VMEM footprint per channel: double-buffered in/out blocks + canvas.
    per_chan = (2 * (_round_up(HW, 128) + _round_up(HWo, 128)) + LP) * itemsize
    cblk = _choose_cblk(nc, per_chan, min(budget, _FLAT_BLOCK_CAP_BYTES),
                        sublane_align=sub)
    grid = (pl.cdiv(nc, cblk),)
    no_w_pad = (W_out == W)

    def kernel(x_ref, o_ref, canvas_ref):
        # Stage the input rows at lane offset 0 of a 128-aligned canvas, then
        # build the padded plane in vregs (roll on XLU, iota/where on VPU,
        # which have slack in this HBM-bound kernel) and emit ONE dense store.
        canvas_ref[:, :HW] = x_ref[...]
        canvas = canvas_ref[...]
        p = lax.broadcasted_iota(jnp.int32, (cblk, LP), 1)
        out = jnp.zeros((cblk, LP), dtype=dt)
        if no_w_pad:
            # Only H is padded: the whole image shifts by a constant amount.
            shift = ph_l * W
            rolled = pltpu.roll(canvas, shift, axis=1) if shift else canvas
            out = jnp.where((p >= shift) & (p < shift + HW), rolled, out)
        else:
            for h in range(H):           # static unroll; H <= _MAX_UNROLL_ROWS
                start = (h + ph_l) * W_out + pw_l   # flat offset of x[h, 0] in output
                shift = start - h * W               # >= 0
                rolled = pltpu.roll(canvas, shift, axis=1) if shift else canvas
                out = jnp.where((p >= start) & (p < start + W), rolled, out)
        o_ref[...] = out[:, :HWo]

    return pl.pallas_call(
        kernel,
        out_shape=jax.ShapeDtypeStruct((nc, HWo), dt),
        grid=grid,
        in_specs=[pl.BlockSpec((cblk, HW), lambda i: (i, 0))],
        out_specs=pl.BlockSpec((cblk, HWo), lambda i: (i, 0)),
        scratch_shapes=[pltpu.VMEM((cblk, LP), dt)],
        compiler_params=pltpu.CompilerParams(
            dimension_semantics=("parallel",),
            vmem_limit_bytes=int(vmem_limit)),
        cost_estimate=pl.CostEstimate(
            flops=0, transcendentals=0,
            bytes_accessed=itemsize * nc * (HW + HWo)),
    )(x_flat)


def _center_pad_3d(x3, nc, H, W, H_out, W_out, ph_l, ph_r, pw_l, pw_r,
                   vmem_limit, budget):
    """Wide-W path (W_out >= 128): keep W on lanes, H on sublanes."""
    dt = x3.dtype
    itemsize = jnp.dtype(dt).itemsize
    sub = _sublane(itemsize)
    WP = _round_up(W_out, 128)
    has_w_pad = (pw_l > 0) or (pw_r > 0)

    in_chan = _round_up(H, sub) * _round_up(W, 128) * itemsize
    out_chan = _round_up(H_out, sub) * _round_up(W_out, 128) * itemsize
    can_chan = (_round_up(H, sub) * WP * itemsize) if has_w_pad else 0
    per_chan = 2 * (in_chan + out_chan) + can_chan
    cblk = _choose_cblk(nc, per_chan, budget)  # leading dim: no alignment constraint
    grid = (pl.cdiv(nc, cblk),)

    def _store_rows(o_ref, rows):
        # Only full-lane-width stores (the narrow left/right masked strips are
        # gone: the W padding is already baked into `rows` in vregs).
        if ph_l:
            o_ref[:, :ph_l, :] = jnp.zeros((cblk, ph_l, W_out), dt)
        if ph_r:
            o_ref[:, ph_l + H:, :] = jnp.zeros((cblk, ph_r, W_out), dt)
        o_ref[:, ph_l:ph_l + H, :] = rows

    if has_w_pad:
        def kernel(x_ref, o_ref, canvas_ref):
            canvas_ref[:, :, :W] = x_ref[...]
            c = canvas_ref[...]
            lane = lax.broadcasted_iota(jnp.int32, (cblk, H, WP), 2)
            rolled = pltpu.roll(c, pw_l, axis=2) if pw_l else c
            rows = jnp.where((lane >= pw_l) & (lane < pw_l + W),
                             rolled, jnp.zeros_like(rolled))[:, :, :W_out]
            _store_rows(o_ref, rows)
        scratch = [pltpu.VMEM((cblk, H, WP), dt)]
    else:
        def kernel(x_ref, o_ref):
            _store_rows(o_ref, x_ref[...])
        scratch = []

    return pl.pallas_call(
        kernel,
        out_shape=jax.ShapeDtypeStruct((nc, H_out, W_out), dt),
        grid=grid,
        in_specs=[pl.BlockSpec((cblk, H, W), lambda i: (i, 0, 0))],
        out_specs=pl.BlockSpec((cblk, H_out, W_out), lambda i: (i, 0, 0)),
        scratch_shapes=scratch,
        compiler_params=pltpu.CompilerParams(
            dimension_semantics=("parallel",),
            vmem_limit_bytes=int(vmem_limit)),
        cost_estimate=pl.CostEstimate(
            flops=0, transcendentals=0,
            bytes_accessed=itemsize * nc * (H * W + H_out * W_out)),
    )(x3)


def center_padding(x, multiple):
    """Zero-pad H and W of an NCHW tensor up to a multiple, centered."""
    N, C, H, W = x.shape
    ph_l, ph_r = _get_pad(H, multiple)
    pw_l, pw_r = _get_pad(W, multiple)
    H_out = H + ph_l + ph_r
    W_out = W + pw_l + pw_r

    # Fast path: nothing to pad.
    if ph_l == ph_r == pw_l == pw_r == 0:
        return x

    nc = N * C
    phys = _vmem_capacity_bytes()
    vmem_limit = min(phys // 2, 96 * 1024 * 1024)  # 32 MiB on v7x, 64 MiB on v5e/v6e
    budget = vmem_limit // 2                       # headroom for compiler scratch

    itemsize = jnp.dtype(x.dtype).itemsize
    use_flat = (
        W_out < 128
        and ((pw_l == 0 and pw_r == 0) or H <= _MAX_UNROLL_ROWS)
        and H_out * W_out <= (1 << 16)             # keep the unrolled path cheap
    )
    if use_flat:
        out = _center_pad_flat(x.reshape(nc, H * W), nc, H, W, H_out, W_out,
                               ph_l, pw_l, vmem_limit, budget)
    else:
        out = _center_pad_3d(x.reshape(nc, H, W), nc, H, W, H_out, W_out,
                             ph_l, ph_r, pw_l, pw_r, vmem_limit, budget)
    return out.reshape(N, C, H_out, W_out)


if __name__ == "__main__":
    # CenterPadding has no learnable parameters; only `multiple` is config.
    multiple = 7
    key = jax.random.PRNGKey(0)
    x = jax.random.normal(key, (2, 4, 16, 16), dtype=jnp.float32)

    out = jax.block_until_ready(center_padding(x, multiple))

    # Pure-JAX reference of the PyTorch semantics (F.pad, constant 0).
    ph = _get_pad(x.shape[2], multiple)
    pw = _get_pad(x.shape[3], multiple)
    ref = jnp.pad(x, ((0, 0), (0, 0), ph, pw))
    assert out.shape == ref.shape, (out.shape, ref.shape)
    assert out.dtype == x.dtype
    assert jnp.array_equal(out, ref), "mismatch vs reference (lane-dense path)"

    # Also exercise the wide-W (W_out >= 128) path with a small input.
    x2 = jax.random.normal(jax.random.PRNGKey(0), (1, 2, 130, 132), dtype=jnp.float32)
    out2 = jax.block_until_ready(center_padding(x2, 16))
    ref2 = jnp.pad(x2, ((0, 0), (0, 0), _get_pad(130, 16), _get_pad(132, 16)))
    assert out2.shape == ref2.shape and out2.dtype == x2.dtype
    assert jnp.array_equal(out2, ref2), "mismatch vs reference (wide-W path)"

    print("KERNEL_OK")
</pallas_src>

<mosaic_0001>
module attributes {stable_mosaic.version = 11 : i64} {
  func.func @kernel(%arg0: i32, %arg1: memref<8x256xf32, #tpu.memory_space<vmem>>, %arg2: memref<8x441xf32, #tpu.memory_space<vmem>>, %arg3: memref<8x512xf32, #tpu.memory_space<vmem>>) attributes {dimension_semantics = [#tpu.dimension_semantics<parallel>], iteration_bounds = array<i64: 1>, scalar_prefetch = 0 : i64, scratch_operands = 1 : i64, tpu.core_type = #tpu.core_type<tc>, window_params = [{transform_indices = @transform_0, window_bounds = array<i64: 8, 256>}, {transform_indices = @transform_1, window_bounds = array<i64: 8, 441>}]} {
    %c0 = arith.constant 0 : index
    %c0_0 = arith.constant 0 : index
    %0 = vector.load %arg1[%c0, %c0_0] : memref<8x256xf32, #tpu.memory_space<vmem>>, vector<8x256xf32>
    %c0_1 = arith.constant 0 : index
    %c0_2 = arith.constant 0 : index
    %1 = vector.load %arg3[%c0_1, %c0_2] : memref<8x512xf32, #tpu.memory_space<vmem>>, vector<8x256xf32>
    tpu.vector_store %arg3[%c0_1, %c0_2], %0 {strides = array<i32>} : memref<8x512xf32, #tpu.memory_space<vmem>>, vector<8x256xf32>,
    %c0_3 = arith.constant 0 : index
    %c0_4 = arith.constant 0 : index
    %2 = vector.load %arg3[%c0_3, %c0_4] : memref<8x512xf32, #tpu.memory_space<vmem>>, vector<8x512xf32>
    %3 = tpu.iota {dimensions = array<i32: 1>} : vector<8x512xi32>
    %cst = arith.constant 0.000000e+00 : f32
    %4 = vector.broadcast %cst : f32 to vector<8x512xf32>
    %c44_i32 = arith.constant 44 : i32
    %5 = tpu.dynamic_rotate %2 by %c44_i32 dim 1 : vector<8x512xf32>, i32 -> vector<8x512xf32>
    %c44_i32_5 = arith.constant 44 : i32
    %6 = vector.broadcast %c44_i32_5 : i32 to vector<8x512xi32>
    %7 = arith.cmpi sge, %3, %6 : vector<8x512xi32>
    %c60_i32 = arith.constant 60 : i32
    %8 = vector.broadcast %c60_i32 : i32 to vector<8x512xi32>
    %9 = arith.cmpi slt, %3, %8 : vector<8x512xi32>
    %10 = arith.andi %7, %9 : vector<8x512xi1>
    %11 = arith.select %10, %5, %4 : vector<8x512xi1>, vector<8x512xf32>
    %c49_i32 = arith.constant 49 : i32
    %12 = tpu.dynamic_rotate %2 by %c49_i32 dim 1 : vector<8x512xf32>, i32 -> vector<8x512xf32>
    %c65_i32 = arith.constant 65 : i32
    %13 = vector.broadcast %c65_i32 : i32 to vector<8x512xi32>
    %14 = arith.cmpi sge, %3, %13 : vector<8x512xi32>
    %c81_i32 = arith.constant 81 : i32
    %15 = vector.broadcast %c81_i32 : i32 to vector<8x512xi32>
    %16 = arith.cmpi slt, %3, %15 : vector<8x512xi32>
    %17 = arith.andi %14, %16 : vector<8x512xi1>
    %18 = arith.select %17, %12, %11 : vector<8x512xi1>, vector<8x512xf32>
    %c54_i32 = arith.constant 54 : i32
    %19 = tpu.dynamic_rotate %2 by %c54_i32 dim 1 : vector<8x512xf32>, i32 -> vector<8x512xf32>
    %c86_i32 = arith.constant 86 : i32
    %20 = vector.broadcast %c86_i32 : i32 to vector<8x512xi32>
    %21 = arith.cmpi sge, %3, %20 : vector<8x512xi32>
    %c102_i32 = arith.constant 102 : i32
    %22 = vector.broadcast %c102_i32 : i32 to vector<8x512xi32>
    %23 = arith.cmpi slt, %3, %22 : vector<8x512xi32>
    %24 = arith.andi %21, %23 : vector<8x512xi1>
    %25 = arith.select %24, %19, %18 : vector<8x512xi1>, vector<8x512xf32>
    %c59_i32 = arith.constant 59 : i32
    %26 = tpu.dynamic_rotate %2 by %c59_i32 dim 1 : vector<8x512xf32>, i32 -> vector<8x512xf32>
    %c107_i32 = arith.constant 107 : i32
    %27 = vector.broadcast %c107_i32 : i32 to vector<8x512xi32>
    %28 = arith.cmpi sge, %3, %27 : vector<8x512xi32>
    %c123_i32 = arith.constant 123 : i32
    %29 = vector.broadcast %c123_i32 : i32 to vector<8x512xi32>
    %30 = arith.cmpi slt, %3, %29 : vector<8x512xi32>
    %31 = arith.andi %28, %30 : vector<8x512xi1>
    %32 = arith.select %31, %26, %25 : vector<8x512xi1>, vector<8x512xf32>
    %c64_i32 = arith.constant 64 : i32
    %33 = tpu.dynamic_rotate %2 by %c64_i32 dim 1 : vector<8x512xf32>, i32 -> vector<8x512xf32>
    %c128_i32 = arith.constant 128 : i32
    %34 = vector.broadcast %c128_i32 : i32 to vector<8x512xi32>
    %35 = arith.cmpi sge, %3, %34 : vector<8x512xi32>
    %c144_i32 = arith.constant 144 : i32
    %36 = vector.broadcast %c144_i32 : i32 to vector<8x512xi32>
    %37 = arith.cmpi slt, %3, %36 : vector<8x512xi32>
    %38 = arith.andi %35, %37 : vector<8x512xi1>
    %39 = arith.select %38, %33, %32 : vector<8x512xi1>, vector<8x512xf32>
    %c69_i32 = arith.constant 69 : i32
    %40 = tpu.dynamic_rotate %2 by %c69_i32 dim 1 : vector<8x512xf32>, i32 -> vector<8x512xf32>
    %c149_i32 = arith.constant 149 : i32
    %41 = vector.broadcast %c149_i32 : i32 to vector<8x512xi32>
    %42 = arith.cmpi sge, %3, %41 : vector<8x512xi32>
    %c165_i32 = arith.constant 165 : i32
    %43 = vector.broadcast %c165_i32 : i32 to vector<8x512xi32>
    %44 = arith.cmpi slt, %3, %43 : vector<8x512xi32>
    %45 = arith.andi %42, %44 : vector<8x512xi1>
    %46 = arith.select %45, %40, %39 : vector<8x512xi1>, vector<8x512xf32>
    %c74_i32 = arith.constant 74 : i32
    %47 = tpu.dynamic_rotate %2 by %c74_i32 dim 1 : vector<8x512xf32>, i32 -> vector<8x512xf32>
    %c170_i32 = arith.constant 170 : i32
    %48 = vector.broadcast %c170_i32 : i32 to vector<8x512xi32>
    %49 = arith.cmpi sge, %3, %48 : vector<8x512xi32>
    %c186_i32 = arith.constant 186 : i32
    %50 = vector.broadcast %c186_i32 : i32 to vector<8x512xi32>
    %51 = arith.cmpi slt, %3, %50 : vector<8x512xi32>
    %52 = arith.andi %49, %51 : vector<8x512xi1>
    %53 = arith.select %52, %47, %46 : vector<8x512xi1>, vector<8x512xf32>
    %c79_i32 = arith.constant 79 : i32
    %54 = tpu.dynamic_rotate %2 by %c79_i32 dim 1 : vector<8x512xf32>, i32 -> vector<8x512xf32>
    %c191_i32 = arith.constant 191 : i32
    %55 = vector.broadcast %c191_i32 : i32 to vector<8x512xi32>
    %56 = arith.cmpi sge, %3, %55 : vector<8x512xi32>
    %c207_i32 = arith.constant 207 : i32
    %57 = vector.broadcast %c207_i32 : i32 to vector<8x512xi32>
    %58 = arith.cmpi slt, %3, %57 : vector<8x512xi32>
    %59 = arith.andi %56, %58 : vector<8x512xi1>
    %60 = arith.select %59, %54, %53 : vector<8x512xi1>, vector<8x512xf32>
    %c84_i32 = arith.constant 84 : i32
    %61 = tpu.dynamic_rotate %2 by %c84_i32 dim 1 : vector<8x512xf32>, i32 -> vector<8x512xf32>
    %c212_i32 = arith.constant 212 : i32
    %62 = vector.broadcast %c212_i32 : i32 to vector<8x512xi32>
    %63 = arith.cmpi sge, %3, %62 : vector<8x512xi32>
    %c228_i32 = arith.constant 228 : i32
    %64 = vector.broadcast %c228_i32 : i32 to vector<8x512xi32>
    %65 = arith.cmpi slt, %3, %64 : vector<8x512xi32>
    %66 = arith.andi %63, %65 : vector<8x512xi1>
    %67 = arith.select %66, %61, %60 : vector<8x512xi1>, vector<8x512xf32>
    %c89_i32 = arith.constant 89 : i32
    %68 = tpu.dynamic_rotate %2 by %c89_i32 dim 1 : vector<8x512xf32>, i32 -> vector<8x512xf32>
    %c233_i32 = arith.constant 233 : i32
    %69 = vector.broadcast %c233_i32 : i32 to vector<8x512xi32>
    %70 = arith.cmpi sge, %3, %69 : vector<8x512xi32>
    %c249_i32 = arith.constant 249 : i32
    %71 = vector.broadcast %c249_i32 : i32 to vector<8x512xi32>
    %72 = arith.cmpi slt, %3, %71 : vector<8x512xi32>
    %73 = arith.andi %70, %72 : vector<8x512xi1>
    %74 = arith.select %73, %68, %67 : vector<8x512xi1>, vector<8x512xf32>
    %c94_i32 = arith.constant 94 : i32
    %75 = tpu.dynamic_rotate %2 by %c94_i32 dim 1 : vector<8x512xf32>, i32 -> vector<8x512xf32>
    %c254_i32 = arith.constant 254 : i32
    %76 = vector.broadcast %c254_i32 : i32 to vector<8x512xi32>
    %77 = arith.cmpi sge, %3, %76 : vector<8x512xi32>
    %c270_i32 = arith.constant 270 : i32
    %78 = vector.broadcast %c270_i32 : i32 to vector<8x512xi32>
    %79 = arith.cmpi slt, %3, %78 : vector<8x512xi32>
    %80 = arith.andi %77, %79 : vector<8x512xi1>
    %81 = arith.select %80, %75, %74 : vector<8x512xi1>, vector<8x512xf32>
    %c99_i32 = arith.constant 99 : i32
    %82 = tpu.dynamic_rotate %2 by %c99_i32 dim 1 : vector<8x512xf32>, i32 -> vector<8x512xf32>
    %c275_i32 = arith.constant 275 : i32
    %83 = vector.broadcast %c275_i32 : i32 to vector<8x512xi32>
    %84 = arith.cmpi sge, %3, %83 : vector<8x512xi32>
    %c291_i32 = arith.constant 291 : i32
    %85 = vector.broadcast %c291_i32 : i32 to vector<8x512xi32>
    %86 = arith.cmpi slt, %3, %85 : vector<8x512xi32>
    %87 = arith.andi %84, %86 : vector<8x512xi1>
    %88 = arith.select %87, %82, %81 : vector<8x512xi1>, vector<8x512xf32>
    %c104_i32 = arith.constant 104 : i32
    %89 = tpu.dynamic_rotate %2 by %c104_i32 dim 1 : vector<8x512xf32>, i32 -> vector<8x512xf32>
    %c296_i32 = arith.constant 296 : i32
    %90 = vector.broadcast %c296_i32 : i32 to vector<8x512xi32>
    %91 = arith.cmpi sge, %3, %90 : vector<8x512xi32>
    %c312_i32 = arith.constant 312 : i32
    %92 = vector.broadcast %c312_i32 : i32 to vector<8x512xi32>
    %93 = arith.cmpi slt, %3, %92 : vector<8x512xi32>
    %94 = arith.andi %91, %93 : vector<8x512xi1>
    %95 = arith.select %94, %89, %88 : vector<8x512xi1>, vector<8x512xf32>
    %c109_i32 = arith.constant 109 : i32
    %96 = tpu.dynamic_rotate %2 by %c109_i32 dim 1 : vector<8x512xf32>, i32 -> vector<8x512xf32>
    %c317_i32 = arith.constant 317 : i32
    %97 = vector.broadcast %c317_i32 : i32 to vector<8x512xi32>
    %98 = arith.cmpi sge, %3, %97 : vector<8x512xi32>
    %c333_i32 = arith.constant 333 : i32
    %99 = vector.broadcast %c333_i32 : i32 to vector<8x512xi32>
    %100 = arith.cmpi slt, %3, %99 : vector<8x512xi32>
    %101 = arith.andi %98, %100 : vector<8x512xi1>
    %102 = arith.select %101, %96, %95 : vector<8x512xi1>, vector<8x512xf32>
    %c114_i32 = arith.constant 114 : i32
    %103 = tpu.dynamic_rotate %2 by %c114_i32 dim 1 : vector<8x512xf32>, i32 -> vector<8x512xf32>
    %c338_i32 = arith.constant 338 : i32
    %104 = vector.broadcast %c338_i32 : i32 to vector<8x512xi32>
    %105 = arith.cmpi sge, %3, %104 : vector<8x512xi32>
    %c354_i32 = arith.constant 354 : i32
    %106 = vector.broadcast %c354_i32 : i32 to vector<8x512xi32>
    %107 = arith.cmpi slt, %3, %106 : vector<8x512xi32>
    %108 = arith.andi %105, %107 : vector<8x512xi1>
    %109 = arith.select %108, %103, %102 : vector<8x512xi1>, vector<8x512xf32>
    %c119_i32 = arith.constant 119 : i32
    %110 = tpu.dynamic_rotate %2 by %c119_i32 dim 1 : vector<8x512xf32>, i32 -> vector<8x512xf32>
    %c359_i32 = arith.constant 359 : i32
    %111 = vector.broadcast %c359_i32 : i32 to vector<8x512xi32>
    %112 = arith.cmpi sge, %3, %111 : vector<8x512xi32>
    %c375_i32 = arith.constant 375 : i32
    %113 = vector.broadcast %c375_i32 : i32 to vector<8x512xi32>
    %114 = arith.cmpi slt, %3, %113 : vector<8x512xi32>
    %115 = arith.andi %112, %114 : vector<8x512xi1>
    %116 = arith.select %115, %110, %109 : vector<8x512xi1>, vector<8x512xf32>
    %117 = vector.extract_strided_slice %116 {offsets = [0, 0], sizes = [8, 441], strides = [1, 1]} : vector<8x512xf32> to vector<8x441xf32>
    %c0_6 = arith.constant 0 : index
    %c0_7 = arith.constant 0 : index
    %118 = vector.load %arg2[%c0_6, %c0_7] : memref<8x441xf32, #tpu.memory_space<vmem>>, vector<8x441xf32>
    tpu.vector_store %arg2[%c0_6, %c0_7], %117 {strides = array<i32>} : memref<8x441xf32, #tpu.memory_space<vmem>>, vector<8x441xf32>,
    return
  }
  func.func @transform_0(%arg0: i32) -> (i32, i32) {
    %c0_i32 = arith.constant 0 : i32
    %c0_i32_0 = arith.constant 0 : i32
    return %arg0, %c0_i32 : i32, i32
  }
  func.func @transform_1(%arg0: i32) -> (i32, i32) {
    %c0_i32 = arith.constant 0 : i32
    %c0_i32_0 = arith.constant 0 : i32
    return %arg0, %c0_i32 : i32, i32
  }
}

</mosaic_0001>

<llo_original>
// kernel: tpu_custom_call.1
$region0: #{tpu_custom_call.1}
  #allocation0 [shape = 'u32[]', space=smem, size = 0x4, offset = 0x4, fixed_abs, tag = 'smem constant byte address 0x4 - core index']
  #allocation1 [shape = 'u32[144,128]{1,0:T(1,128)}', space=vmem, size = 0x12000, scoped, tag = 'internal scratch']
  #allocation2 [shape = 'f32[8,512]{1,0:T(8,128)}', space=vmem, size = 0x4000, scoped, tag = 'scratch operand']
  %s0 = inlined_call_operand.hbm [shape: f32[8,256], index: 0, kind: input, shape index: {}]
  %s1 = inlined_call_operand.hbm [shape: f32[8,441], index: 1, kind: output, shape index: {}]
  %s2 = sld [smem:[#allocation0]]
  $region18: #{tpu_custom_call.1} parent=0
    _
  %s4 = ssub.s32 1, %s2
  %s5 = scalar_select 0, %s4, %s2
  $region1: #{tpu_custom_call.1} parent=0
    #allocation3 [shape = 'u8[8192]{0}', space=vmem, size = 0x2000, scoped, tag = 'input window, operand 0, single buffered']
    #allocation4 [shape = 's32[1]{0}', space=sflag, size = 0x4, scoped, tag = 'scoped memory for tpu_custom_call.1']
    #allocation5 [shape = 's32[1]{0}', space=sflag, size = 0x4, scoped, tag = 'scoped memory for tpu_custom_call.1']
    #allocation6 [shape = 'u8[16384]{0}', space=vmem, size = 0x4000, scoped, tag = 'output window, operand 0, single buffered']
    %6 = vsyncpa [#allocation4], 0
    %7 = vsyncpa [#allocation5], 0
    // Predicated region
    $region2: #{tpu_custom_call.1} parent=1 // pred_check
      _
    $region3: #{tpu_custom_call.1} parent=1 // pred_check_branch
      %9 = sbr.rel (0) target = $region5
    $region4: #{tpu_custom_call.1} parent=1 // pred_region
      %s11 = ssub.s32 256, 256
      %12 = vsyncadd [#allocation4], %s11
      %s14 = sshll.u32 [#allocation3], 4
      %s15 = int_to_ptr.vmem [resolvable:$true] %s14
      %17 = dma.hbm_to_vmem [thread:$0]  %s0, 256, %s15, [#allocation4]
    $region5: #{tpu_custom_call.1} parent=1 // pred_fallthru
      _
    // Predicated region
    $region6: #{tpu_custom_call.1} parent=1 // pred_check
      _
    $region7: #{tpu_custom_call.1} parent=1 // pred_check_branch
      %19 = sbr.rel (0) target = $region9
    $region8: #{tpu_custom_call.1} parent=1 // pred_region
      %20 = dma.done [#allocation4], 256
    $region9: #{tpu_custom_call.1} parent=1 // pred_fallthru
      _
    %v21 = vld [vmem:[#allocation3] sm:$0xff]
    %v22 = vld [vmem:[#allocation3 + $0x8] sm:$0xff]
    %23 = vst [vmem:[#allocation2] sm:$0xff] %v21
    %24 = vst [vmem:[#allocation2 + $0x8] sm:$0xff] %v22
    %v25 = vld [vmem:[#allocation2] sm:$0xff]
    %v26 = vld [vmem:[#allocation2 + $0x8] sm:$0xff]
    %v27 = vld [vmem:[#allocation2 + $0x10] sm:$0xff]
    %v28 = vld [vmem:[#allocation2 + $0x18] sm:$0xff]
    %v29 = vlaneseq
    %v30 = vand.u32 %v29, 127
    %v31 = vadd.s32 %v30, 128
    %v32 = vadd.s32 %v30, 256
    %v33 = vadd.s32 %v30, 384
    %34 = vrot.lane.b32.xlu0 %v25, 44
    %v35 = vpop.permute.xlu0 %34
    %36 = vrot.lane.b32.xlu0 %v26, 44
    %v37 = vpop.permute.xlu0 %36
    %38 = vrot.lane.b32.xlu0 %v27, 44
    %v39 = vpop.permute.xlu0 %38
    %40 = vrot.lane.b32.xlu0 %v28, 44
    %v41 = vpop.permute.xlu0 %40
    %vm42 = vcmp.lt.s32.totalorder %v30, 44
    %v43 = vsel %vm42, %v39, %v41
    %v44 = vsel %vm42, %v37, %v39
    %v45 = vsel %vm42, %v35, %v37
    %v46 = vsel %vm42, %v41, %v35
    %vm47 = vcmp.ge.s32.totalorder %v30, 44
    %vm48 = vcmp.ge.s32.totalorder %v31, 44
    %vm49 = vcmp.ge.s32.totalorder %v32, 44
    %vm50 = vcmp.ge.s32.totalorder %v33, 44
    %vm51 = vcmp.lt.s32.totalorder %v30, 60
    %vm52 = vcmp.lt.s32.totalorder %v31, 60
    %vm53 = vcmp.lt.s32.totalorder %v32, 60
    %vm54 = vcmp.lt.s32.totalorder %v33, 60
    %vm55 = vmand %vm47, %vm51
    %vm56 = vmand %vm48, %vm52
    %vm57 = vmand %vm49, %vm53
    %vm58 = vmand %vm50, %vm54
    %v59 = vsel %vm55, %v46, 0.0
    %v60 = vsel %vm56, %v45, 0.0
    %v61 = vsel %vm57, %v44, 0.0
    %v62 = vsel %vm58, %v43, 0.0
    %63 = vrot.lane.b32.xlu0 %v25, 49
    %v64 = vpop.permute.xlu0 %63
    %65 = vrot.lane.b32.xlu0 %v26, 49
    %v66 = vpop.permute.xlu0 %65
    %67 = vrot.lane.b32.xlu0 %v27, 49
    %v68 = vpop.permute.xlu0 %67
    %69 = vrot.lane.b32.xlu0 %v28, 49
    %v70 = vpop.permute.xlu0 %69
    %vm71 = vcmp.lt.s32.totalorder %v30, 49
    %v72 = vsel %vm71, %v68, %v70
    %v73 = vsel %vm71, %v66, %v68
    %v74 = vsel %vm71, %v64, %v66
    %v75 = vsel %vm71, %v70, %v64
    %vm76 = vcmp.ge.s32.totalorder %v30, 65
    %vm77 = vcmp.ge.s32.totalorder %v31, 65
    %vm78 = vcmp.ge.s32.totalorder %v32, 65
    %vm79 = vcmp.ge.s32.totalorder %v33, 65
    %vm80 = vcmp.lt.s32.totalorder %v30, 81
    %vm81 = vcmp.lt.s32.totalorder %v31, 81
    %vm82 = vcmp.lt.s32.totalorder %v32, 81
    %vm83 = vcmp.lt.s32.totalorder %v33, 81
    %vm84 = vmand %vm76, %vm80
    %vm85 = vmand %vm77, %vm81
    %vm86 = vmand %vm78, %vm82
    %vm87 = vmand %vm79, %vm83
    %v88 = vsel %vm84, %v75, %v59
    %v89 = vsel %vm85, %v74, %v60
    %v90 = vsel %vm86, %v73, %v61
    %v91 = vsel %vm87, %v72, %v62
    %92 = vrot.lane.b32.xlu0 %v25, 54
    %v93 = vpop.permute.xlu0 %92
    %94 = vrot.lane.b32.xlu0 %v26, 54
    %v95 = vpop.permute.xlu0 %94
    %96 = vrot.lane.b32.xlu0 %v27, 54
    %v97 = vpop.permute.xlu0 %96
    %98 = vrot.lane.b32.xlu0 %v28, 54
    %v99 = vpop.permute.xlu0 %98
    %vm100 = vcmp.lt.s32.totalorder %v30, 54
    %v101 = vsel %vm100, %v97, %v99
    %v102 = vsel %vm100, %v95, %v97
    %v103 = vsel %vm100, %v93, %v95
    %v104 = vsel %vm100, %v99, %v93
    %vm105 = vcmp.ge.s32.totalorder %v30, 86
    %vm106 = vcmp.ge.s32.totalorder %v31, 86
    %vm107 = vcmp.ge.s32.totalorder %v32, 86
    %vm108 = vcmp.ge.s32.totalorder %v33, 86
    %vm109 = vcmp.lt.s32.totalorder %v30, 102
    %vm110 = vcmp.lt.s32.totalorder %v31, 102
    %vm111 = vcmp.lt.s32.totalorder %v32, 102
    %vm112 = vcmp.lt.s32.totalorder %v33, 102
    %vm113 = vmand %vm105, %vm109
    %vm114 = vmand %vm106, %vm110
    %vm115 = vmand %vm107, %vm111
    %vm116 = vmand %vm108, %vm112
    %v117 = vsel %vm113, %v104, %v88
    %v118 = vsel %vm114, %v103, %v89
    %v119 = vsel %vm115, %v102, %v90
    %v120 = vsel %vm116, %v101, %v91
    %121 = vrot.lane.b32.xlu0 %v25, 59
    %v122 = vpop.permute.xlu0 %121
    %123 = vrot.lane.b32.xlu0 %v26, 59
    %v124 = vpop.permute.xlu0 %123
    %125 = vrot.lane.b32.xlu0 %v27, 59
    %v126 = vpop.permute.xlu0 %125
    %127 = vrot.lane.b32.xlu0 %v28, 59
    %v128 = vpop.permute.xlu0 %127
    %vm129 = vcmp.lt.s32.totalorder %v30, 59
    %v130 = vsel %vm129, %v126, %v128
    %v131 = vsel %vm129, %v124, %v126
    %v132 = vsel %vm129, %v122, %v124
    %v133 = vsel %vm129, %v128, %v122
    %vm134 = vcmp.ge.s32.totalorder %v30, 107
    %vm135 = vcmp.ge.s32.totalorder %v31, 107
    %vm136 = vcmp.ge.s32.totalorder %v32, 107
    %vm137 = vcmp.ge.s32.totalorder %v33, 107
    %vm138 = vcmp.lt.s32.totalorder %v30, 123
    %vm139 = vcmp.lt.s32.totalorder %v31, 123
    %vm140 = vcmp.lt.s32.totalorder %v32, 123
    %vm141 = vcmp.lt.s32.totalorder %v33, 123
    %vm142 = vmand %vm134, %vm138
    %vm143 = vmand %vm135, %vm139
    %vm144 = vmand %vm136, %vm140
    %vm145 = vmand %vm137, %vm141
    %v146 = vsel %vm142, %v133, %v117
    %v147 = vsel %vm143, %v132, %v118
    %v148 = vsel %vm144, %v131, %v119
    %v149 = vsel %vm145, %v130, %v120
    %150 = vrot.lane.b32.xlu0 %v25, 64
    %v151 = vpop.permute.xlu0 %150
    %152 = vrot.lane.b32.xlu0 %v26, 64
    %v153 = vpop.permute.xlu0 %152
    %154 = vrot.lane.b32.xlu0 %v27, 64
    %v155 = vpop.permute.xlu0 %154
    %156 = vrot.lane.b32.xlu0 %v28, 64
    %v157 = vpop.permute.xlu0 %156
    %vm158 = vcmp.lt.s32.totalorder %v30, 64
    %v159 = vsel %vm158, %v155, %v157
    %v160 = vsel %vm158, %v153, %v155
    %v161 = vsel %vm158, %v151, %v153
    %v162 = vsel %vm158, %v157, %v151
    %vm163 = vcmp.ge.s32.totalorder %v30, 128
    %vm164 = vcmp.ge.s32.totalorder %v31, 128
    %vm165 = vcmp.ge.s32.totalorder %v32, 128
    %vm166 = vcmp.ge.s32.totalorder %v33, 128
    %vm167 = vcmp.lt.s32.totalorder %v30, 144
    %vm168 = vcmp.lt.s32.totalorder %v31, 144
    %vm169 = vcmp.lt.s32.totalorder %v32, 144
    %vm170 = vcmp.lt.s32.totalorder %v33, 144
    %vm171 = vmand %vm163, %vm167
    %vm172 = vmand %vm164, %vm168
    %vm173 = vmand %vm165, %vm169
    %vm174 = vmand %vm166, %vm170
    %v175 = vsel %vm171, %v162, %v146
    %v176 = vsel %vm172, %v161, %v147
    %v177 = vsel %vm173, %v160, %v148
    %v178 = vsel %vm174, %v159, %v149
    %179 = vrot.lane.b32.xlu0 %v25, 69
    %v180 = vpop.permute.xlu0 %179
    %181 = vrot.lane.b32.xlu0 %v26, 69
    %v182 = vpop.permute.xlu0 %181
    %183 = vrot.lane.b32.xlu0 %v27, 69
    %v184 = vpop.permute.xlu0 %183
    %185 = vrot.lane.b32.xlu0 %v28, 69
    %v186 = vpop.permute.xlu0 %185
    %vm187 = vcmp.lt.s32.totalorder %v30, 69
    %v188 = vsel %vm187, %v184, %v186
    %v189 = vsel %vm187, %v182, %v184
    %v190 = vsel %vm187, %v180, %v182
    %v191 = vsel %vm187, %v186, %v180
    %vm192 = vcmp.ge.s32.totalorder %v30, 149
    %vm193 = vcmp.ge.s32.totalorder %v31, 149
    %vm194 = vcmp.ge.s32.totalorder %v32, 149
    %vm195 = vcmp.ge.s32.totalorder %v33, 149
    %vm196 = vcmp.lt.s32.totalorder %v30, 165
    %vm197 = vcmp.lt.s32.totalorder %v31, 165
    %vm198 = vcmp.lt.s32.totalorder %v32, 165
    %vm199 = vcmp.lt.s32.totalorder %v33, 165
    %vm200 = vmand %vm192, %vm196
    %vm201 = vmand %vm193, %vm197
    %vm202 = vmand %vm194, %vm198
    %vm203 = vmand %vm195, %vm199
    %v204 = vsel %vm200, %v191, %v175
    %v205 = vsel %vm201, %v190, %v176
    %v206 = vsel %vm202, %v189, %v177
    %v207 = vsel %vm203, %v188, %v178
    %208 = vrot.lane.b32.xlu0 %v25, 74
    %v209 = vpop.permute.xlu0 %208
    %210 = vrot.lane.b32.xlu0 %v26, 74
    %v211 = vpop.permute.xlu0 %210
    %212 = vrot.lane.b32.xlu0 %v27, 74
    %v213 = vpop.permute.xlu0 %212
    %214 = vrot.lane.b32.xlu0 %v28, 74
    %v215 = vpop.permute.xlu0 %214
    %vm216 = vcmp.lt.s32.totalorder %v30, 74
    %v217 = vsel %vm216, %v213, %v215
    %v218 = vsel %vm216, %v211, %v213
    %v219 = vsel %vm216, %v209, %v211
    %v220 = vsel %vm216, %v215, %v209
    %vm221 = vcmp.ge.s32.totalorder %v30, 170
    %vm222 = vcmp.ge.s32.totalorder %v31, 170
    %vm223 = vcmp.ge.s32.totalorder %v32, 170
    %vm224 = vcmp.ge.s32.totalorder %v33, 170
    %vm225 = vcmp.lt.s32.totalorder %v30, 186
    %vm226 = vcmp.lt.s32.totalorder %v31, 186
    %vm227 = vcmp.lt.s32.totalorder %v32, 186
    %vm228 = vcmp.lt.s32.totalorder %v33, 186
    %vm229 = vmand %vm221, %vm225
    %vm230 = vmand %vm222, %vm226
    %vm231 = vmand %vm223, %vm227
    %vm232 = vmand %vm224, %vm228
    %v233 = vsel %vm229, %v220, %v204
    %v234 = vsel %vm230, %v219, %v205
    %v235 = vsel %vm231, %v218, %v206
    %v236 = vsel %vm232, %v217, %v207
    %237 = vrot.lane.b32.xlu0 %v25, 79
    %v238 = vpop.permute.xlu0 %237
    %239 = vrot.lane.b32.xlu0 %v26, 79
    %v240 = vpop.permute.xlu0 %239
    %241 = vrot.lane.b32.xlu0 %v27, 79
    %v242 = vpop.permute.xlu0 %241
    %243 = vrot.lane.b32.xlu0 %v28, 79
    %v244 = vpop.permute.xlu0 %243
    %vm245 = vcmp.lt.s32.totalorder %v30, 79
    %v246 = vsel %vm245, %v242, %v244
    %v247 = vsel %vm245, %v240, %v242
    %v248 = vsel %vm245, %v238, %v240
    %v249 = vsel %vm245, %v244, %v238
    %vm250 = vcmp.ge.s32.totalorder %v30, 191
    %vm251 = vcmp.ge.s32.totalorder %v31, 191
    %vm252 = vcmp.ge.s32.totalorder %v32, 191
    %vm253 = vcmp.ge.s32.totalorder %v33, 191
    %vm254 = vcmp.lt.s32.totalorder %v30, 207
    %vm255 = vcmp.lt.s32.totalorder %v31, 207
    %vm256 = vcmp.lt.s32.totalorder %v32, 207
    %vm257 = vcmp.lt.s32.totalorder %v33, 207
    %vm258 = vmand %vm250, %vm254
    %vm259 = vmand %vm251, %vm255
    %vm260 = vmand %vm252, %vm256
    %vm261 = vmand %vm253, %vm257
    %v262 = vsel %vm258, %v249, %v233
    %v263 = vsel %vm259, %v248, %v234
    %v264 = vsel %vm260, %v247, %v235
    %v265 = vsel %vm261, %v246, %v236
    %266 = vrot.lane.b32.xlu0 %v25, 84
    %v267 = vpop.permute.xlu0 %266
    %268 = vrot.lane.b32.xlu0 %v26, 84
    %v269 = vpop.permute.xlu0 %268
    %270 = vrot.lane.b32.xlu0 %v27, 84
    %v271 = vpop.permute.xlu0 %270
    %272 = vrot.lane.b32.xlu0 %v28, 84
    %v273 = vpop.permute.xlu0 %272
    %vm274 = vcmp.lt.s32.totalorder %v30, 84
    %v275 = vsel %vm274, %v271, %v273
    %v276 = vsel %vm274, %v269, %v271
    %v277 = vsel %vm274, %v267, %v269
    %v278 = vsel %vm274, %v273, %v267
    %vm279 = vcmp.ge.s32.totalorder %v30, 212
    %vm280 = vcmp.ge.s32.totalorder %v31, 212
    %vm281 = vcmp.ge.s32.totalorder %v32, 212
    %vm282 = vcmp.ge.s32.totalorder %v33, 212
    %vm283 = vcmp.lt.s32.totalorder %v30, 228
    %vm284 = vcmp.lt.s32.totalorder %v31, 228
    %vm285 = vcmp.lt.s32.totalorder %v32, 228
    %vm286 = vcmp.lt.s32.totalorder %v33, 228
    %vm287 = vmand %vm279, %vm283
    %vm288 = vmand %vm280, %vm284
    %vm289 = vmand %vm281, %vm285
    %vm290 = vmand %vm282, %vm286
    %v291 = vsel %vm287, %v278, %v262
    %v292 = vsel %vm288, %v277, %v263
    %v293 = vsel %vm289, %v276, %v264
    %v294 = vsel %vm290, %v275, %v265
    %295 = vrot.lane.b32.xlu0 %v25, 89
    %v296 = vpop.permute.xlu0 %295
    %297 = vrot.lane.b32.xlu0 %v26, 89
    %v298 = vpop.permute.xlu0 %297
    %299 = vrot.lane.b32.xlu0 %v27, 89
    %v300 = vpop.permute.xlu0 %299
    %301 = vrot.lane.b32.xlu0 %v28, 89
    %v302 = vpop.permute.xlu0 %301
    %vm303 = vcmp.lt.s32.totalorder %v30, 89
    %v304 = vsel %vm303, %v300, %v302
    %v305 = vsel %vm303, %v298, %v300
    %v306 = vsel %vm303, %v296, %v298
    %v307 = vsel %vm303, %v302, %v296
    %vm308 = vcmp.ge.s32.totalorder %v30, 233
    %vm309 = vcmp.ge.s32.totalorder %v31, 233
    %vm310 = vcmp.ge.s32.totalorder %v32, 233
    %vm311 = vcmp.ge.s32.totalorder %v33, 233
    %vm312 = vcmp.lt.s32.totalorder %v30, 249
    %vm313 = vcmp.lt.s32.totalorder %v31, 249
    %vm314 = vcmp.lt.s32.totalorder %v32, 249
    %vm315 = vcmp.lt.s32.totalorder %v33, 249
    %vm316 = vmand %vm308, %vm312
    %vm317 = vmand %vm309, %vm313
    %vm318 = vmand %vm310, %vm314
    %vm319 = vmand %vm311, %vm315
    %v320 = vsel %vm316, %v307, %v291
    %v321 = vsel %vm317, %v306, %v292
    %v322 = vsel %vm318, %v305, %v293
    %v323 = vsel %vm319, %v304, %v294
    %324 = vrot.lane.b32.xlu0 %v25, 94
    %v325 = vpop.permute.xlu0 %324
    %326 = vrot.lane.b32.xlu0 %v26, 94
    %v327 = vpop.permute.xlu0 %326
    %328 = vrot.lane.b32.xlu0 %v27, 94
    %v329 = vpop.permute.xlu0 %328
    %330 = vrot.lane.b32.xlu0 %v28, 94
    %v331 = vpop.permute.xlu0 %330
    %vm332 = vcmp.lt.s32.totalorder %v30, 94
    %v333 = vsel %vm332, %v329, %v331
    %v334 = vsel %vm332, %v327, %v329
    %v335 = vsel %vm332, %v325, %v327
    %v336 = vsel %vm332, %v331, %v325
    %vm337 = vcmp.ge.s32.totalorder %v30, 254
    %vm338 = vcmp.ge.s32.totalorder %v31, 254
    %vm339 = vcmp.ge.s32.totalorder %v32, 254
    %vm340 = vcmp.ge.s32.totalorder %v33, 254
    %vm341 = vcmp.lt.s32.totalorder %v30, 270
    %vm342 = vcmp.lt.s32.totalorder %v31, 270
    %vm343 = vcmp.lt.s32.totalorder %v32, 270
    %vm344 = vcmp.lt.s32.totalorder %v33, 270
    %vm345 = vmand %vm337, %vm341
    %vm346 = vmand %vm338, %vm342
    %vm347 = vmand %vm339, %vm343
    %vm348 = vmand %vm340, %vm344
    %v349 = vsel %vm345, %v336, %v320
    %v350 = vsel %vm346, %v335, %v321
    %v351 = vsel %vm347, %v334, %v322
    %v352 = vsel %vm348, %v333, %v323
    %353 = vrot.lane.b32.xlu0 %v25, 99
    %v354 = vpop.permute.xlu0 %353
    %355 = vrot.lane.b32.xlu0 %v26, 99
    %v356 = vpop.permute.xlu0 %355
    %357 = vrot.lane.b32.xlu0 %v27, 99
    %v358 = vpop.permute.xlu0 %357
    %359 = vrot.lane.b32.xlu0 %v28, 99
    %v360 = vpop.permute.xlu0 %359
    %vm361 = vcmp.lt.s32.totalorder %v30, 99
    %v362 = vsel %vm361, %v358, %v360
    %v363 = vsel %vm361, %v356, %v358
    %v364 = vsel %vm361, %v354, %v356
    %v365 = vsel %vm361, %v360, %v354
    %vm366 = vcmp.ge.s32.totalorder %v30, 275
    %vm367 = vcmp.ge.s32.totalorder %v31, 275
    %vm368 = vcmp.ge.s32.totalorder %v32, 275
    %vm369 = vcmp.ge.s32.totalorder %v33, 275
    %vm370 = vcmp.lt.s32.totalorder %v30, 291
    %vm371 = vcmp.lt.s32.totalorder %v31, 291
    %vm372 = vcmp.lt.s32.totalorder %v32, 291
    %vm373 = vcmp.lt.s32.totalorder %v33, 291
    %vm374 = vmand %vm366, %vm370
    %vm375 = vmand %vm367, %vm371
    %vm376 = vmand %vm368, %vm372
    %vm377 = vmand %vm369, %vm373
    %v378 = vsel %vm374, %v365, %v349
    %v379 = vsel %vm375, %v364, %v350
    %v380 = vsel %vm376, %v363, %v351
    %v381 = vsel %vm377, %v362, %v352
    %382 = vrot.lane.b32.xlu0 %v25, 104
    %v383 = vpop.permute.xlu0 %382
    %384 = vrot.lane.b32.xlu0 %v26, 104
    %v385 = vpop.permute.xlu0 %384
    %386 = vrot.lane.b32.xlu0 %v27, 104
    %v387 = vpop.permute.xlu0 %386
    %388 = vrot.lane.b32.xlu0 %v28, 104
    %v389 = vpop.permute.xlu0 %388
    %vm390 = vcmp.lt.s32.totalorder %v30, 104
    %v391 = vsel %vm390, %v387, %v389
    %v392 = vsel %vm390, %v385, %v387
    %v393 = vsel %vm390, %v383, %v385
    %v394 = vsel %vm390, %v389, %v383
    %vm395 = vcmp.ge.s32.totalorder %v30, 296
    %vm396 = vcmp.ge.s32.totalorder %v31, 296
    %vm397 = vcmp.ge.s32.totalorder %v32, 296
    %vm398 = vcmp.ge.s32.totalorder %v33, 296
    %vm399 = vcmp.lt.s32.totalorder %v30, 312
    %vm400 = vcmp.lt.s32.totalorder %v31, 312
    %vm401 = vcmp.lt.s32.totalorder %v32, 312
    %vm402 = vcmp.lt.s32.totalorder %v33, 312
    %vm403 = vmand %vm395, %vm399
    %vm404 = vmand %vm396, %vm400
    %vm405 = vmand %vm397, %vm401
    %vm406 = vmand %vm398, %vm402
    %v407 = vsel %vm403, %v394, %v378
    %v408 = vsel %vm404, %v393, %v379
    %v409 = vsel %vm405, %v392, %v380
    %v410 = vsel %vm406, %v391, %v381
    %411 = vrot.lane.b32.xlu0 %v25, 109
    %v412 = vpop.permute.xlu0 %411
    %413 = vrot.lane.b32.xlu0 %v26, 109
    %v414 = vpop.permute.xlu0 %413
    %415 = vrot.lane.b32.xlu0 %v27, 109
    %v416 = vpop.permute.xlu0 %415
    %417 = vrot.lane.b32.xlu0 %v28, 109
    %v418 = vpop.permute.xlu0 %417
    %vm419 = vcmp.lt.s32.totalorder %v30, 109
    %v420 = vsel %vm419, %v416, %v418
    %v421 = vsel %vm419, %v414, %v416
    %v422 = vsel %vm419, %v412, %v414
    %v423 = vsel %vm419, %v418, %v412
    %vm424 = vcmp.ge.s32.totalorder %v30, 317
    %vm425 = vcmp.ge.s32.totalorder %v31, 317
    %vm426 = vcmp.ge.s32.totalorder %v32, 317
    %vm427 = vcmp.ge.s32.totalorder %v33, 317
    %vm428 = vcmp.lt.s32.totalorder %v30, 333
    %vm429 = vcmp.lt.s32.totalorder %v31, 333
    %vm430 = vcmp.lt.s32.totalorder %v32, 333
    %vm431 = vcmp.lt.s32.totalorder %v33, 333
    %vm432 = vmand %vm424, %vm428
    %vm433 = vmand %vm425, %vm429
    %vm434 = vmand %vm426, %vm430
    %vm435 = vmand %vm427, %vm431
    %v436 = vsel %vm432, %v423, %v407
    %v437 = vsel %vm433, %v422, %v408
    %v438 = vsel %vm434, %v421, %v409
    %v439 = vsel %vm435, %v420, %v410
    %440 = vrot.lane.b32.xlu0 %v25, 114
    %v441 = vpop.permute.xlu0 %440
    %442 = vrot.lane.b32.xlu0 %v26, 114
    %v443 = vpop.permute.xlu0 %442
    %444 = vrot.lane.b32.xlu0 %v27, 114
    %v445 = vpop.permute.xlu0 %444
    %446 = vrot.lane.b32.xlu0 %v28, 114
    %v447 = vpop.permute.xlu0 %446
    %vm448 = vcmp.lt.s32.totalorder %v30, 114
    %v449 = vsel %vm448, %v445, %v447
    %v450 = vsel %vm448, %v443, %v445
    %v451 = vsel %vm448, %v441, %v443
    %v452 = vsel %vm448, %v447, %v441
    %vm453 = vcmp.ge.s32.totalorder %v30, 338
    %vm454 = vcmp.ge.s32.totalorder %v31, 338
    %vm455 = vcmp.ge.s32.totalorder %v32, 338
    %vm456 = vcmp.ge.s32.totalorder %v33, 338
    %vm457 = vcmp.lt.s32.totalorder %v30, 354
    %vm458 = vcmp.lt.s32.totalorder %v31, 354
    %vm459 = vcmp.lt.s32.totalorder %v32, 354
    %vm460 = vcmp.lt.s32.totalorder %v33, 354
    %vm461 = vmand %vm453, %vm457
    %vm462 = vmand %vm454, %vm458
    %vm463 = vmand %vm455, %vm459
    %vm464 = vmand %vm456, %vm460
    %v465 = vsel %vm461, %v452, %v436
    %v466 = vsel %vm462, %v451, %v437
    %v467 = vsel %vm463, %v450, %v438
    %v468 = vsel %vm464, %v449, %v439
    %469 = vrot.lane.b32.xlu0 %v25, 119
    %v470 = vpop.permute.xlu0 %469
    %471 = vrot.lane.b32.xlu0 %v26, 119
    %v472 = vpop.permute.xlu0 %471
    %473 = vrot.lane.b32.xlu0 %v27, 119
    %v474 = vpop.permute.xlu0 %473
    %475 = vrot.lane.b32.xlu0 %v28, 119
    %v476 = vpop.permute.xlu0 %475
    %vm477 = vcmp.lt.s32.totalorder %v30, 119
    %v478 = vsel %vm477, %v474, %v476
    %v479 = vsel %vm477, %v472, %v474
    %v480 = vsel %vm477, %v470, %v472
    %v481 = vsel %vm477, %v476, %v470
    %vm482 = vcmp.ge.s32.totalorder %v30, 359
    %vm483 = vcmp.ge.s32.totalorder %v31, 359
    %vm484 = vcmp.ge.s32.totalorder %v32, 359
    %vm485 = vcmp.ge.s32.totalorder %v33, 359
    %vm486 = vcmp.lt.s32.totalorder %v30, 375
    %vm487 = vcmp.lt.s32.totalorder %v31, 375
    %vm488 = vcmp.lt.s32.totalorder %v32, 375
    %vm489 = vcmp.lt.s32.totalorder %v33, 375
    %vm490 = vmand %vm482, %vm486
    %vm491 = vmand %vm483, %vm487
    %vm492 = vmand %vm484, %vm488
    %vm493 = vmand %vm485, %vm489
    %v494 = vsel %vm490, %v481, %v465
    %v495 = vsel %vm491, %v480, %v466
    %v496 = vsel %vm492, %v479, %v467
    %v497 = vsel %vm493, %v478, %v468
    %498 = vst [vmem:[#allocation6] sm:$0xff] %v494
    %499 = vst [vmem:[#allocation6 + $0x8] sm:$0xff] %v495
    %500 = vst [vmem:[#allocation6 + $0x10] sm:$0xff] %v496
    %vm501 = vcmask 465920
    %502 = vst.msk [vmem:[#allocation6 + $0x18] sm:$0xff] %vm501, %v497
    // Predicated region
    $region10: #{tpu_custom_call.1} parent=1 // pred_check
      _
    $region11: #{tpu_custom_call.1} parent=1 // pred_check_branch
      %504 = sbr.rel (0) target = $region13
    $region12: #{tpu_custom_call.1} parent=1 // pred_region
      %s506 = ssub.s32 512, 512
      %507 = vsyncadd [#allocation5], %s506
      %s509 = sshll.u32 [#allocation6], 4
      %s510 = int_to_ptr.vmem [resolvable:$true] %s509
      %512 = dma.vmem_to_hbm [thread:$0]  %s510, 512, %s1, [#allocation5]
    $region13: #{tpu_custom_call.1} parent=1 // pred_fallthru
      _
    // Predicated region
    $region14: #{tpu_custom_call.1} parent=1 // pred_check
      _
    $region15: #{tpu_custom_call.1} parent=1 // pred_check_branch
      %514 = sbr.rel (0) target = $region17
    $region16: #{tpu_custom_call.1} parent=1 // pred_region
      %515 = dma.done [#allocation5], 512
    $region17: #{tpu_custom_call.1} parent=1 // pred_fallthru
      _
    %516 = vsyncpa [#allocation4], 1
    %517 = vsyncpa [#allocation5], 1

</llo_original>
